<compile_context>
chip_gen: v7x
topology: tpu7x:2x2x1
jax: 0.10.0
libtpu: 0.0.40
codegen_flags: <defaults>
</compile_context>

<pallas_src>
import jax
import jax.numpy as jnp
from jax.experimental import pallas as pl
from jax.experimental.pallas import tpu as pltpu


def sgns_kernel(input_word_ref, context_ref,      # SMEM scalar-prefetch index refs
                in_emb_hbm, ctx_emb_hbm,          # HBM (pl.ANY) embedding tables (V, D)
                out_ref,                          # VMEM output (1, n_pad)
                in_vec_ref,                       # VMEM scratch (1, D)
                ctx_rows_ref,                     # VMEM scratch (n_pad, D)
                dma_sems):                        # DMA semaphores (n_context + 1,)
    n_context = context_ref.shape[0]
    n_pad = out_ref.shape[1]

    # ---- Gather: issue every row DMA first (all in flight concurrently) ----
    in_cp = pltpu.make_async_copy(
        in_emb_hbm.at[pl.ds(input_word_ref[0], 1), :],
        in_vec_ref,
        dma_sems.at[n_context])
    in_cp.start()

    ctx_cps = []
    for j in range(n_context):                     # static unroll; independent DMAs
        cp = pltpu.make_async_copy(
            ctx_emb_hbm.at[pl.ds(context_ref[j], 1), :],
            ctx_rows_ref.at[pl.ds(j, 1), :],
            dma_sems.at[j])
        cp.start()
        ctx_cps.append(cp)

    in_cp.wait()
    for cp in ctx_cps:
        cp.wait()

    # ---- Scores: contract (1, D) with (n_pad, D) over D -> (1, n_pad) ----
    dot = jax.lax.dot_general(
        in_vec_ref[...], ctx_rows_ref[...],
        dimension_numbers=(((1,), (1,)), ((), ())),
        preferred_element_type=jnp.float32)

    # Mask pad lanes (rows never DMA'd; contents are stale VMEM) to -inf so they
    # contribute zero probability.
    lane = jax.lax.broadcasted_iota(jnp.int32, (1, n_pad), 1)
    dot = jnp.where(lane < n_context, dot, -jnp.inf)

    # ---- Softmax over the lane axis ----
    m = jnp.max(dot, axis=-1, keepdims=True)
    e = jnp.exp(dot - m)
    denom = jnp.sum(e, axis=-1, keepdims=True)
    inv = pl.reciprocal(denom, approx=True)        # EUP slot; VALU stays free
    out_ref[...] = (e * inv).astype(out_ref.dtype)


def sgns_forward(input_word, context, in_emb, ctx_emb):
    vocab_size, embed_dim = in_emb.shape
    n_context = int(context.shape[0])
    n_pad = ((n_context + 127) // 128) * 128       # lane-dense output width

    # Clamp indices (nn.Embedding errors on OOB; TPU DMA would silently misread).
    input_word = jnp.clip(input_word.astype(jnp.int32), 0, vocab_size - 1)
    context = jnp.clip(context.astype(jnp.int32), 0, vocab_size - 1)

    grid_spec = pltpu.PrefetchScalarGridSpec(
        num_scalar_prefetch=2,                     # indices land in SMEM
        grid=(1,),
        in_specs=[
            pl.BlockSpec(memory_space=pl.ANY),     # input_embedding table stays in HBM
            pl.BlockSpec(memory_space=pl.ANY),     # context_embedding table stays in HBM
        ],
        out_specs=pl.BlockSpec((1, n_pad), lambda i, iw, ctx: (0, 0)),
        scratch_shapes=[
            pltpu.VMEM((1, embed_dim), jnp.float32),
            pltpu.VMEM((n_pad, embed_dim), jnp.float32),
            pltpu.SemaphoreType.DMA((n_context + 1,)),
        ],
    )

    padded = pl.pallas_call(
        sgns_kernel,
        out_shape=jax.ShapeDtypeStruct((1, n_pad), jnp.float32),
        grid_spec=grid_spec,
        compiler_params=pltpu.CompilerParams(
            dimension_semantics=("arbitrary",)),
    )(input_word, context, in_emb, ctx_emb)

    return padded[:, :n_context]                   # back to the true (1, N)


def sgns_reference(input_word, context, in_emb, ctx_emb):
    in_vec = in_emb[input_word[0]].reshape(1, -1)  # (1, D)
    ctx_vecs = ctx_emb[context]                    # (N, D)
    dot = in_vec @ ctx_vecs.T                      # (1, N)
    return jax.nn.softmax(dot, axis=-1)


if __name__ == "__main__":
    # Small demo shapes; embed_dim=128 keeps rows lane-dense (vreg lane width).
    vocab_size, embed_dim, n_context = 256, 128, 8

    key = jax.random.PRNGKey(0)
    k_in, k_ctx, k_iw, k_c = jax.random.split(key, 4)

    # nn.Embedding default init: N(0, 1)
    in_emb = jax.random.normal(k_in, (vocab_size, embed_dim), dtype=jnp.float32)
    ctx_emb = jax.random.normal(k_ctx, (vocab_size, embed_dim), dtype=jnp.float32)

    input_word = jax.random.randint(k_iw, (1,), 0, vocab_size, dtype=jnp.int32)
    context = jax.random.randint(k_c, (n_context,), 0, vocab_size, dtype=jnp.int32)

    scores = sgns_forward(input_word, context, in_emb, ctx_emb)
    scores = jax.block_until_ready(scores)

    ref = sgns_reference(input_word, context, in_emb, ctx_emb)
    assert scores.shape == (1, n_context)
    # Tolerance accounts for the approximate EUP reciprocal in the normalization;
    # any gather/dot/softmax bug would produce O(0.1) errors, far above this.
    assert jnp.allclose(scores, ref, atol=1e-3, rtol=1e-2), (scores, ref)
    assert abs(float(scores.sum()) - 1.0) < 1e-2

    print("KERNEL_OK")
</pallas_src>

<mosaic_0001>
module attributes {stable_mosaic.version = 11 : i64} {
  func.func @sgns_kernel(%arg0: i32, %arg1: memref<1xi32, #tpu.memory_space<smem>>, %arg2: memref<8xi32, #tpu.memory_space<smem>>, %arg3: memref<256x128xf32, #tpu.memory_space<any>>, %arg4: memref<256x128xf32, #tpu.memory_space<any>>, %arg5: memref<1x128xf32, #tpu.memory_space<vmem>>, %arg6: memref<1x128xf32, #tpu.memory_space<vmem>>, %arg7: memref<128x128xf32, #tpu.memory_space<vmem>>, %arg8: memref<9x!tpu.dma_semaphore, #tpu.memory_space<semaphore_mem>>) attributes {dimension_semantics = [#tpu.dimension_semantics<arbitrary>], iteration_bounds = array<i64: 1>, scalar_prefetch = 2 : i64, scratch_operands = 3 : i64, tpu.core_type = #tpu.core_type<tc>, window_params = [{}, {}, {pipeline_mode = #tpu.pipeline_mode<synchronous>, transform_indices = @transform_2, window_bounds = array<i64: 1, 128>}]} {
    %c0 = arith.constant 0 : index
    %0 = memref.load %arg1[%c0] : memref<1xi32, #tpu.memory_space<smem>>
    %c8_i32 = arith.constant 8 : i32
    %c0_i32 = arith.constant 0 : i32
    %1 = tpu.memref_slice %arg3[%0, %c0_i32] : memref<256x128xf32, #tpu.memory_space<any>> -> memref<1x128xf32, #tpu.memory_space<any>>
    %2 = tpu.memref_slice %arg8[%c8_i32] : memref<9x!tpu.dma_semaphore, #tpu.memory_space<semaphore_mem>> -> memref<1x!tpu.dma_semaphore, #tpu.memory_space<semaphore_mem>>
    %3 = tpu.memref_squeeze %2 : memref<1x!tpu.dma_semaphore, #tpu.memory_space<semaphore_mem>> -> memref<!tpu.dma_semaphore, #tpu.memory_space<semaphore_mem>>
    tpu.enqueue_dma source(%1 : memref<1x128xf32, #tpu.memory_space<any>>) target(%arg6 : memref<1x128xf32, #tpu.memory_space<vmem>>) target_semaphore(%3 : memref<!tpu.dma_semaphore, #tpu.memory_space<semaphore_mem>>)
    %c0_0 = arith.constant 0 : index
    %4 = memref.load %arg2[%c0_0] : memref<8xi32, #tpu.memory_space<smem>>
    %c0_i32_1 = arith.constant 0 : i32
    %c0_i32_2 = arith.constant 0 : i32
    %5 = tpu.memref_slice %arg4[%4, %c0_i32_2] : memref<256x128xf32, #tpu.memory_space<any>> -> memref<1x128xf32, #tpu.memory_space<any>>
    %c0_i32_3 = arith.constant 0 : i32
    %c0_i32_4 = arith.constant 0 : i32
    %6 = tpu.memref_slice %arg7[%c0_i32_3, %c0_i32_4] : memref<128x128xf32, #tpu.memory_space<vmem>> -> memref<1x128xf32, #tpu.memory_space<vmem>>
    %7 = tpu.memref_slice %arg8[%c0_i32_1] : memref<9x!tpu.dma_semaphore, #tpu.memory_space<semaphore_mem>> -> memref<1x!tpu.dma_semaphore, #tpu.memory_space<semaphore_mem>>
    %8 = tpu.memref_squeeze %7 : memref<1x!tpu.dma_semaphore, #tpu.memory_space<semaphore_mem>> -> memref<!tpu.dma_semaphore, #tpu.memory_space<semaphore_mem>>
    tpu.enqueue_dma source(%5 : memref<1x128xf32, #tpu.memory_space<any>>) target(%6 : memref<1x128xf32, #tpu.memory_space<vmem>>) target_semaphore(%8 : memref<!tpu.dma_semaphore, #tpu.memory_space<semaphore_mem>>)
    %c1 = arith.constant 1 : index
    %9 = memref.load %arg2[%c1] : memref<8xi32, #tpu.memory_space<smem>>
    %c1_i32 = arith.constant 1 : i32
    %c0_i32_5 = arith.constant 0 : i32
    %10 = tpu.memref_slice %arg4[%9, %c0_i32_5] : memref<256x128xf32, #tpu.memory_space<any>> -> memref<1x128xf32, #tpu.memory_space<any>>
    %c1_i32_6 = arith.constant 1 : i32
    %c0_i32_7 = arith.constant 0 : i32
    %11 = tpu.memref_slice %arg7[%c1_i32_6, %c0_i32_7] : memref<128x128xf32, #tpu.memory_space<vmem>> -> memref<1x128xf32, #tpu.memory_space<vmem>>
    %12 = tpu.memref_slice %arg8[%c1_i32] : memref<9x!tpu.dma_semaphore, #tpu.memory_space<semaphore_mem>> -> memref<1x!tpu.dma_semaphore, #tpu.memory_space<semaphore_mem>>
    %13 = tpu.memref_squeeze %12 : memref<1x!tpu.dma_semaphore, #tpu.memory_space<semaphore_mem>> -> memref<!tpu.dma_semaphore, #tpu.memory_space<semaphore_mem>>
    tpu.enqueue_dma source(%10 : memref<1x128xf32, #tpu.memory_space<any>>) target(%11 : memref<1x128xf32, #tpu.memory_space<vmem>>) target_semaphore(%13 : memref<!tpu.dma_semaphore, #tpu.memory_space<semaphore_mem>>)
    %c2 = arith.constant 2 : index
    %14 = memref.load %arg2[%c2] : memref<8xi32, #tpu.memory_space<smem>>
    %c2_i32 = arith.constant 2 : i32
    %c0_i32_8 = arith.constant 0 : i32
    %15 = tpu.memref_slice %arg4[%14, %c0_i32_8] : memref<256x128xf32, #tpu.memory_space<any>> -> memref<1x128xf32, #tpu.memory_space<any>>
    %c2_i32_9 = arith.constant 2 : i32
    %c0_i32_10 = arith.constant 0 : i32
    %16 = tpu.memref_slice %arg7[%c2_i32_9, %c0_i32_10] : memref<128x128xf32, #tpu.memory_space<vmem>> -> memref<1x128xf32, #tpu.memory_space<vmem>>
    %17 = tpu.memref_slice %arg8[%c2_i32] : memref<9x!tpu.dma_semaphore, #tpu.memory_space<semaphore_mem>> -> memref<1x!tpu.dma_semaphore, #tpu.memory_space<semaphore_mem>>
    %18 = tpu.memref_squeeze %17 : memref<1x!tpu.dma_semaphore, #tpu.memory_space<semaphore_mem>> -> memref<!tpu.dma_semaphore, #tpu.memory_space<semaphore_mem>>
    tpu.enqueue_dma source(%15 : memref<1x128xf32, #tpu.memory_space<any>>) target(%16 : memref<1x128xf32, #tpu.memory_space<vmem>>) target_semaphore(%18 : memref<!tpu.dma_semaphore, #tpu.memory_space<semaphore_mem>>)
    %c3 = arith.constant 3 : index
    %19 = memref.load %arg2[%c3] : memref<8xi32, #tpu.memory_space<smem>>
    %c3_i32 = arith.constant 3 : i32
    %c0_i32_11 = arith.constant 0 : i32
    %20 = tpu.memref_slice %arg4[%19, %c0_i32_11] : memref<256x128xf32, #tpu.memory_space<any>> -> memref<1x128xf32, #tpu.memory_space<any>>
    %c3_i32_12 = arith.constant 3 : i32
    %c0_i32_13 = arith.constant 0 : i32
    %21 = tpu.memref_slice %arg7[%c3_i32_12, %c0_i32_13] : memref<128x128xf32, #tpu.memory_space<vmem>> -> memref<1x128xf32, #tpu.memory_space<vmem>>
    %22 = tpu.memref_slice %arg8[%c3_i32] : memref<9x!tpu.dma_semaphore, #tpu.memory_space<semaphore_mem>> -> memref<1x!tpu.dma_semaphore, #tpu.memory_space<semaphore_mem>>
    %23 = tpu.memref_squeeze %22 : memref<1x!tpu.dma_semaphore, #tpu.memory_space<semaphore_mem>> -> memref<!tpu.dma_semaphore, #tpu.memory_space<semaphore_mem>>
    tpu.enqueue_dma source(%20 : memref<1x128xf32, #tpu.memory_space<any>>) target(%21 : memref<1x128xf32, #tpu.memory_space<vmem>>) target_semaphore(%23 : memref<!tpu.dma_semaphore, #tpu.memory_space<semaphore_mem>>)
    %c4 = arith.constant 4 : index
    %24 = memref.load %arg2[%c4] : memref<8xi32, #tpu.memory_space<smem>>
    %c4_i32 = arith.constant 4 : i32
    %c0_i32_14 = arith.constant 0 : i32
    %25 = tpu.memref_slice %arg4[%24, %c0_i32_14] : memref<256x128xf32, #tpu.memory_space<any>> -> memref<1x128xf32, #tpu.memory_space<any>>
    %c4_i32_15 = arith.constant 4 : i32
    %c0_i32_16 = arith.constant 0 : i32
    %26 = tpu.memref_slice %arg7[%c4_i32_15, %c0_i32_16] : memref<128x128xf32, #tpu.memory_space<vmem>> -> memref<1x128xf32, #tpu.memory_space<vmem>>
    %27 = tpu.memref_slice %arg8[%c4_i32] : memref<9x!tpu.dma_semaphore, #tpu.memory_space<semaphore_mem>> -> memref<1x!tpu.dma_semaphore, #tpu.memory_space<semaphore_mem>>
    %28 = tpu.memref_squeeze %27 : memref<1x!tpu.dma_semaphore, #tpu.memory_space<semaphore_mem>> -> memref<!tpu.dma_semaphore, #tpu.memory_space<semaphore_mem>>
    tpu.enqueue_dma source(%25 : memref<1x128xf32, #tpu.memory_space<any>>) target(%26 : memref<1x128xf32, #tpu.memory_space<vmem>>) target_semaphore(%28 : memref<!tpu.dma_semaphore, #tpu.memory_space<semaphore_mem>>)
    %c5 = arith.constant 5 : index
    %29 = memref.load %arg2[%c5] : memref<8xi32, #tpu.memory_space<smem>>
    %c5_i32 = arith.constant 5 : i32
    %c0_i32_17 = arith.constant 0 : i32
    %30 = tpu.memref_slice %arg4[%29, %c0_i32_17] : memref<256x128xf32, #tpu.memory_space<any>> -> memref<1x128xf32, #tpu.memory_space<any>>
    %c5_i32_18 = arith.constant 5 : i32
    %c0_i32_19 = arith.constant 0 : i32
    %31 = tpu.memref_slice %arg7[%c5_i32_18, %c0_i32_19] : memref<128x128xf32, #tpu.memory_space<vmem>> -> memref<1x128xf32, #tpu.memory_space<vmem>>
    %32 = tpu.memref_slice %arg8[%c5_i32] : memref<9x!tpu.dma_semaphore, #tpu.memory_space<semaphore_mem>> -> memref<1x!tpu.dma_semaphore, #tpu.memory_space<semaphore_mem>>
    %33 = tpu.memref_squeeze %32 : memref<1x!tpu.dma_semaphore, #tpu.memory_space<semaphore_mem>> -> memref<!tpu.dma_semaphore, #tpu.memory_space<semaphore_mem>>
    tpu.enqueue_dma source(%30 : memref<1x128xf32, #tpu.memory_space<any>>) target(%31 : memref<1x128xf32, #tpu.memory_space<vmem>>) target_semaphore(%33 : memref<!tpu.dma_semaphore, #tpu.memory_space<semaphore_mem>>)
    %c6 = arith.constant 6 : index
    %34 = memref.load %arg2[%c6] : memref<8xi32, #tpu.memory_space<smem>>
    %c6_i32 = arith.constant 6 : i32
    %c0_i32_20 = arith.constant 0 : i32
    %35 = tpu.memref_slice %arg4[%34, %c0_i32_20] : memref<256x128xf32, #tpu.memory_space<any>> -> memref<1x128xf32, #tpu.memory_space<any>>
    %c6_i32_21 = arith.constant 6 : i32
    %c0_i32_22 = arith.constant 0 : i32
    %36 = tpu.memref_slice %arg7[%c6_i32_21, %c0_i32_22] : memref<128x128xf32, #tpu.memory_space<vmem>> -> memref<1x128xf32, #tpu.memory_space<vmem>>
    %37 = tpu.memref_slice %arg8[%c6_i32] : memref<9x!tpu.dma_semaphore, #tpu.memory_space<semaphore_mem>> -> memref<1x!tpu.dma_semaphore, #tpu.memory_space<semaphore_mem>>
    %38 = tpu.memref_squeeze %37 : memref<1x!tpu.dma_semaphore, #tpu.memory_space<semaphore_mem>> -> memref<!tpu.dma_semaphore, #tpu.memory_space<semaphore_mem>>
    tpu.enqueue_dma source(%35 : memref<1x128xf32, #tpu.memory_space<any>>) target(%36 : memref<1x128xf32, #tpu.memory_space<vmem>>) target_semaphore(%38 : memref<!tpu.dma_semaphore, #tpu.memory_space<semaphore_mem>>)
    %c7 = arith.constant 7 : index
    %39 = memref.load %arg2[%c7] : memref<8xi32, #tpu.memory_space<smem>>
    %c7_i32 = arith.constant 7 : i32
    %c0_i32_23 = arith.constant 0 : i32
    %40 = tpu.memref_slice %arg4[%39, %c0_i32_23] : memref<256x128xf32, #tpu.memory_space<any>> -> memref<1x128xf32, #tpu.memory_space<any>>
    %c7_i32_24 = arith.constant 7 : i32
    %c0_i32_25 = arith.constant 0 : i32
    %41 = tpu.memref_slice %arg7[%c7_i32_24, %c0_i32_25] : memref<128x128xf32, #tpu.memory_space<vmem>> -> memref<1x128xf32, #tpu.memory_space<vmem>>
    %42 = tpu.memref_slice %arg8[%c7_i32] : memref<9x!tpu.dma_semaphore, #tpu.memory_space<semaphore_mem>> -> memref<1x!tpu.dma_semaphore, #tpu.memory_space<semaphore_mem>>
    %43 = tpu.memref_squeeze %42 : memref<1x!tpu.dma_semaphore, #tpu.memory_space<semaphore_mem>> -> memref<!tpu.dma_semaphore, #tpu.memory_space<semaphore_mem>>
    tpu.enqueue_dma source(%40 : memref<1x128xf32, #tpu.memory_space<any>>) target(%41 : memref<1x128xf32, #tpu.memory_space<vmem>>) target_semaphore(%43 : memref<!tpu.dma_semaphore, #tpu.memory_space<semaphore_mem>>)
    %c8_i32_26 = arith.constant 8 : i32
    %c0_i32_27 = arith.constant 0 : i32
    %44 = tpu.memref_slice %arg3[%0, %c0_i32_27] : memref<256x128xf32, #tpu.memory_space<any>> -> memref<1x128xf32, #tpu.memory_space<any>>
    %45 = tpu.memref_slice %arg8[%c8_i32_26] : memref<9x!tpu.dma_semaphore, #tpu.memory_space<semaphore_mem>> -> memref<1x!tpu.dma_semaphore, #tpu.memory_space<semaphore_mem>>
    %46 = tpu.memref_squeeze %45 : memref<1x!tpu.dma_semaphore, #tpu.memory_space<semaphore_mem>> -> memref<!tpu.dma_semaphore, #tpu.memory_space<semaphore_mem>>
    tpu.wait_dma2 semaphore(%46 : memref<!tpu.dma_semaphore, #tpu.memory_space<semaphore_mem>>) src(%44 : memref<1x128xf32, #tpu.memory_space<any>>) dst(%arg6 : memref<1x128xf32, #tpu.memory_space<vmem>>)
    %c0_i32_28 = arith.constant 0 : i32
    %c0_i32_29 = arith.constant 0 : i32
    %47 = tpu.memref_slice %arg4[%4, %c0_i32_29] : memref<256x128xf32, #tpu.memory_space<any>> -> memref<1x128xf32, #tpu.memory_space<any>>
    %c0_i32_30 = arith.constant 0 : i32
    %c0_i32_31 = arith.constant 0 : i32
    %48 = tpu.memref_slice %arg7[%c0_i32_30, %c0_i32_31] : memref<128x128xf32, #tpu.memory_space<vmem>> -> memref<1x128xf32, #tpu.memory_space<vmem>>
    %49 = tpu.memref_slice %arg8[%c0_i32_28] : memref<9x!tpu.dma_semaphore, #tpu.memory_space<semaphore_mem>> -> memref<1x!tpu.dma_semaphore, #tpu.memory_space<semaphore_mem>>
    %50 = tpu.memref_squeeze %49 : memref<1x!tpu.dma_semaphore, #tpu.memory_space<semaphore_mem>> -> memref<!tpu.dma_semaphore, #tpu.memory_space<semaphore_mem>>
    tpu.wait_dma2 semaphore(%50 : memref<!tpu.dma_semaphore, #tpu.memory_space<semaphore_mem>>) src(%47 : memref<1x128xf32, #tpu.memory_space<any>>) dst(%48 : memref<1x128xf32, #tpu.memory_space<vmem>>)
    %c1_i32_32 = arith.constant 1 : i32
    %c0_i32_33 = arith.constant 0 : i32
    %51 = tpu.memref_slice %arg4[%9, %c0_i32_33] : memref<256x128xf32, #tpu.memory_space<any>> -> memref<1x128xf32, #tpu.memory_space<any>>
    %c1_i32_34 = arith.constant 1 : i32
    %c0_i32_35 = arith.constant 0 : i32
    %52 = tpu.memref_slice %arg7[%c1_i32_34, %c0_i32_35] : memref<128x128xf32, #tpu.memory_space<vmem>> -> memref<1x128xf32, #tpu.memory_space<vmem>>
    %53 = tpu.memref_slice %arg8[%c1_i32_32] : memref<9x!tpu.dma_semaphore, #tpu.memory_space<semaphore_mem>> -> memref<1x!tpu.dma_semaphore, #tpu.memory_space<semaphore_mem>>
    %54 = tpu.memref_squeeze %53 : memref<1x!tpu.dma_semaphore, #tpu.memory_space<semaphore_mem>> -> memref<!tpu.dma_semaphore, #tpu.memory_space<semaphore_mem>>
    tpu.wait_dma2 semaphore(%54 : memref<!tpu.dma_semaphore, #tpu.memory_space<semaphore_mem>>) src(%51 : memref<1x128xf32, #tpu.memory_space<any>>) dst(%52 : memref<1x128xf32, #tpu.memory_space<vmem>>)
    %c2_i32_36 = arith.constant 2 : i32
    %c0_i32_37 = arith.constant 0 : i32
    %55 = tpu.memref_slice %arg4[%14, %c0_i32_37] : memref<256x128xf32, #tpu.memory_space<any>> -> memref<1x128xf32, #tpu.memory_space<any>>
    %c2_i32_38 = arith.constant 2 : i32
    %c0_i32_39 = arith.constant 0 : i32
    %56 = tpu.memref_slice %arg7[%c2_i32_38, %c0_i32_39] : memref<128x128xf32, #tpu.memory_space<vmem>> -> memref<1x128xf32, #tpu.memory_space<vmem>>
    %57 = tpu.memref_slice %arg8[%c2_i32_36] : memref<9x!tpu.dma_semaphore, #tpu.memory_space<semaphore_mem>> -> memref<1x!tpu.dma_semaphore, #tpu.memory_space<semaphore_mem>>
    %58 = tpu.memref_squeeze %57 : memref<1x!tpu.dma_semaphore, #tpu.memory_space<semaphore_mem>> -> memref<!tpu.dma_semaphore, #tpu.memory_space<semaphore_mem>>
    tpu.wait_dma2 semaphore(%58 : memref<!tpu.dma_semaphore, #tpu.memory_space<semaphore_mem>>) src(%55 : memref<1x128xf32, #tpu.memory_space<any>>) dst(%56 : memref<1x128xf32, #tpu.memory_space<vmem>>)
    %c3_i32_40 = arith.constant 3 : i32
    %c0_i32_41 = arith.constant 0 : i32
    %59 = tpu.memref_slice %arg4[%19, %c0_i32_41] : memref<256x128xf32, #tpu.memory_space<any>> -> memref<1x128xf32, #tpu.memory_space<any>>
    %c3_i32_42 = arith.constant 3 : i32
    %c0_i32_43 = arith.constant 0 : i32
    %60 = tpu.memref_slice %arg7[%c3_i32_42, %c0_i32_43] : memref<128x128xf32, #tpu.memory_space<vmem>> -> memref<1x128xf32, #tpu.memory_space<vmem>>
    %61 = tpu.memref_slice %arg8[%c3_i32_40] : memref<9x!tpu.dma_semaphore, #tpu.memory_space<semaphore_mem>> -> memref<1x!tpu.dma_semaphore, #tpu.memory_space<semaphore_mem>>
    %62 = tpu.memref_squeeze %61 : memref<1x!tpu.dma_semaphore, #tpu.memory_space<semaphore_mem>> -> memref<!tpu.dma_semaphore, #tpu.memory_space<semaphore_mem>>
    tpu.wait_dma2 semaphore(%62 : memref<!tpu.dma_semaphore, #tpu.memory_space<semaphore_mem>>) src(%59 : memref<1x128xf32, #tpu.memory_space<any>>) dst(%60 : memref<1x128xf32, #tpu.memory_space<vmem>>)
    %c4_i32_44 = arith.constant 4 : i32
    %c0_i32_45 = arith.constant 0 : i32
    %63 = tpu.memref_slice %arg4[%24, %c0_i32_45] : memref<256x128xf32, #tpu.memory_space<any>> -> memref<1x128xf32, #tpu.memory_space<any>>
    %c4_i32_46 = arith.constant 4 : i32
    %c0_i32_47 = arith.constant 0 : i32
    %64 = tpu.memref_slice %arg7[%c4_i32_46, %c0_i32_47] : memref<128x128xf32, #tpu.memory_space<vmem>> -> memref<1x128xf32, #tpu.memory_space<vmem>>
    %65 = tpu.memref_slice %arg8[%c4_i32_44] : memref<9x!tpu.dma_semaphore, #tpu.memory_space<semaphore_mem>> -> memref<1x!tpu.dma_semaphore, #tpu.memory_space<semaphore_mem>>
    %66 = tpu.memref_squeeze %65 : memref<1x!tpu.dma_semaphore, #tpu.memory_space<semaphore_mem>> -> memref<!tpu.dma_semaphore, #tpu.memory_space<semaphore_mem>>
    tpu.wait_dma2 semaphore(%66 : memref<!tpu.dma_semaphore, #tpu.memory_space<semaphore_mem>>) src(%63 : memref<1x128xf32, #tpu.memory_space<any>>) dst(%64 : memref<1x128xf32, #tpu.memory_space<vmem>>)
    %c5_i32_48 = arith.constant 5 : i32
    %c0_i32_49 = arith.constant 0 : i32
    %67 = tpu.memref_slice %arg4[%29, %c0_i32_49] : memref<256x128xf32, #tpu.memory_space<any>> -> memref<1x128xf32, #tpu.memory_space<any>>
    %c5_i32_50 = arith.constant 5 : i32
    %c0_i32_51 = arith.constant 0 : i32
    %68 = tpu.memref_slice %arg7[%c5_i32_50, %c0_i32_51] : memref<128x128xf32, #tpu.memory_space<vmem>> -> memref<1x128xf32, #tpu.memory_space<vmem>>
    %69 = tpu.memref_slice %arg8[%c5_i32_48] : memref<9x!tpu.dma_semaphore, #tpu.memory_space<semaphore_mem>> -> memref<1x!tpu.dma_semaphore, #tpu.memory_space<semaphore_mem>>
    %70 = tpu.memref_squeeze %69 : memref<1x!tpu.dma_semaphore, #tpu.memory_space<semaphore_mem>> -> memref<!tpu.dma_semaphore, #tpu.memory_space<semaphore_mem>>
    tpu.wait_dma2 semaphore(%70 : memref<!tpu.dma_semaphore, #tpu.memory_space<semaphore_mem>>) src(%67 : memref<1x128xf32, #tpu.memory_space<any>>) dst(%68 : memref<1x128xf32, #tpu.memory_space<vmem>>)
    %c6_i32_52 = arith.constant 6 : i32
    %c0_i32_53 = arith.constant 0 : i32
    %71 = tpu.memref_slice %arg4[%34, %c0_i32_53] : memref<256x128xf32, #tpu.memory_space<any>> -> memref<1x128xf32, #tpu.memory_space<any>>
    %c6_i32_54 = arith.constant 6 : i32
    %c0_i32_55 = arith.constant 0 : i32
    %72 = tpu.memref_slice %arg7[%c6_i32_54, %c0_i32_55] : memref<128x128xf32, #tpu.memory_space<vmem>> -> memref<1x128xf32, #tpu.memory_space<vmem>>
    %73 = tpu.memref_slice %arg8[%c6_i32_52] : memref<9x!tpu.dma_semaphore, #tpu.memory_space<semaphore_mem>> -> memref<1x!tpu.dma_semaphore, #tpu.memory_space<semaphore_mem>>
    %74 = tpu.memref_squeeze %73 : memref<1x!tpu.dma_semaphore, #tpu.memory_space<semaphore_mem>> -> memref<!tpu.dma_semaphore, #tpu.memory_space<semaphore_mem>>
    tpu.wait_dma2 semaphore(%74 : memref<!tpu.dma_semaphore, #tpu.memory_space<semaphore_mem>>) src(%71 : memref<1x128xf32, #tpu.memory_space<any>>) dst(%72 : memref<1x128xf32, #tpu.memory_space<vmem>>)
    %c7_i32_56 = arith.constant 7 : i32
    %c0_i32_57 = arith.constant 0 : i32
    %75 = tpu.memref_slice %arg4[%39, %c0_i32_57] : memref<256x128xf32, #tpu.memory_space<any>> -> memref<1x128xf32, #tpu.memory_space<any>>
    %c7_i32_58 = arith.constant 7 : i32
    %c0_i32_59 = arith.constant 0 : i32
    %76 = tpu.memref_slice %arg7[%c7_i32_58, %c0_i32_59] : memref<128x128xf32, #tpu.memory_space<vmem>> -> memref<1x128xf32, #tpu.memory_space<vmem>>
    %77 = tpu.memref_slice %arg8[%c7_i32_56] : memref<9x!tpu.dma_semaphore, #tpu.memory_space<semaphore_mem>> -> memref<1x!tpu.dma_semaphore, #tpu.memory_space<semaphore_mem>>
    %78 = tpu.memref_squeeze %77 : memref<1x!tpu.dma_semaphore, #tpu.memory_space<semaphore_mem>> -> memref<!tpu.dma_semaphore, #tpu.memory_space<semaphore_mem>>
    tpu.wait_dma2 semaphore(%78 : memref<!tpu.dma_semaphore, #tpu.memory_space<semaphore_mem>>) src(%75 : memref<1x128xf32, #tpu.memory_space<any>>) dst(%76 : memref<1x128xf32, #tpu.memory_space<vmem>>)
    %c0_60 = arith.constant 0 : index
    %c0_61 = arith.constant 0 : index
    %79 = vector.load %arg6[%c0_60, %c0_61] : memref<1x128xf32, #tpu.memory_space<vmem>>, vector<1x128xf32>
    %c0_62 = arith.constant 0 : index
    %c0_63 = arith.constant 0 : index
    %80 = vector.load %arg7[%c0_62, %c0_63] : memref<128x128xf32, #tpu.memory_space<vmem>>, vector<128x128xf32>
    %cst = arith.constant dense<0.000000e+00> : vector<1x128xf32>
    %81 = tpu.matmul %79, %80, %cst {dimension_numbers = #tpu.dot_dimension_numbers<[1], [1], [0], [0], [0, 0, 1, 0], [], []>} : vector<1x128xf32>, vector<128x128xf32>, vector<1x128xf32> -> vector<1x128xf32>
    %82 = tpu.iota {dimensions = array<i32: 1>} : vector<1x128xi32>
    %c8_i32_64 = arith.constant 8 : i32
    %83 = vector.broadcast %c8_i32_64 : i32 to vector<1x128xi32>
    %84 = arith.cmpi slt, %82, %83 : vector<1x128xi32>
    %cst_65 = arith.constant 0xFF800000 : f32
    %85 = vector.broadcast %cst_65 : f32 to vector<1x128xf32>
    %86 = arith.select %84, %81, %85 : vector<1x128xi1>, vector<1x128xf32>
    %cst_66 = arith.constant dense<0xFF800000> : vector<1xf32>
    %87 = vector.multi_reduction <maximumf>, %86, %cst_66 [1] : vector<1x128xf32> to vector<1xf32>
    %88 = vector.shape_cast %87 : vector<1xf32> to vector<1x1xf32>
    %89 = vector.broadcast %88 : vector<1x1xf32> to vector<1x128xf32>
    %90 = arith.subf %86, %89 : vector<1x128xf32>
    %91 = math.exp %90 : vector<1x128xf32>
    %cst_67 = arith.constant dense<0.000000e+00> : vector<1xf32>
    %92 = vector.multi_reduction <add>, %91, %cst_67 [1] : vector<1x128xf32> to vector<1xf32>
    %93 = vector.shape_cast %92 : vector<1xf32> to vector<1x1xf32>
    %94 = tpu.reciprocal %93 {approx = true} : vector<1x1xf32> -> vector<1x1xf32>
    %95 = vector.broadcast %94 : vector<1x1xf32> to vector<1x128xf32>
    %96 = arith.mulf %91, %95 : vector<1x128xf32>
    %c0_68 = arith.constant 0 : index
    %c0_69 = arith.constant 0 : index
    %97 = vector.load %arg5[%c0_68, %c0_69] : memref<1x128xf32, #tpu.memory_space<vmem>>, vector<1x128xf32>
    tpu.vector_store %arg5[%c0_68, %c0_69], %96 {strides = array<i32>} : memref<1x128xf32, #tpu.memory_space<vmem>>, vector<1x128xf32>,
    return
  }
  func.func @transform_2(%arg0: i32, %arg1: memref<1xi32, #tpu.memory_space<smem>>, %arg2: memref<8xi32, #tpu.memory_space<smem>>) -> (i32, i32) {
    %c0_i32 = arith.constant 0 : i32
    %c0_i32_0 = arith.constant 0 : i32
    %c0_i32_1 = arith.constant 0 : i32
    return %c0_i32, %c0_i32_0 : i32, i32
  }
}

</mosaic_0001>

<llo_original>
// kernel: tpu_custom_call.1
$region0: #{tpu_custom_call.1}
  #allocation0 [shape = 'u32[]', space=smem, size = 0x4, offset = 0x4, fixed_abs, tag = 'smem constant byte address 0x4 - core index']
  #allocation1 [shape = 'u32[144,128]{1,0:T(1,128)}', space=vmem, size = 0x12000, scoped, tag = 'internal scratch']
  #allocation2 [shape = 'f32[1,128]{1,0:T(1,128)}', space=vmem, size = 0x200, scoped, tag = 'scratch operand']
  #allocation3 [shape = 'f32[128,128]{1,0:T(8,128)}', space=vmem, size = 0x10000, scoped, tag = 'scratch operand']
  #allocation4 [shape = 's32[9]{0}', space=sflag, size = 0x24, scoped, tag = 'scratch operand']
  #allocation5 [shape = 's32[1]{0}', space=sflag, size = 0x4, scoped, tag = 'scoped memory for tpu_custom_call.1']
  #allocation6 [shape = 's32[1]{0:T(128)S(6)}', space=smem, size = 0x200, scoped, tag = 'prefetched SMEM operand 0']
  #allocation7 [shape = 'u8[512]{0}', space=smem, size = 0x200, scoped, tag = 'prefetched SMEM operand 1']
  #allocation10 [shape = 's32[]', space=sflag, size = 0x4, offset = 0, fixed_abs, tag = 'sflag constant byte address 0x0 - dummy sync flag']
  #allocation11 [shape = 's32[]', space=sflag, size = 0x4, offset = 0, fixed_abs, tag = 'sflag constant byte address 0x0 - dummy sync flag']
  #allocation12 [shape = 'u32[]', space=smem, size = 0x4, offset = 0x44, fixed_abs, tag = 'smem constant byte address 0x44 - assertion arg 0']
  #allocation13 [shape = 'u32[]', space=smem, size = 0x4, offset = 0x48, fixed_abs, tag = 'smem constant byte address 0x48 - assertion arg 1']
  #allocation14 [shape = 's32[]', space=sflag, size = 0x4, offset = 0, fixed_abs, tag = 'sflag constant byte address 0x0 - dummy sync flag']
  #allocation15 [shape = 's32[]', space=sflag, size = 0x4, offset = 0, fixed_abs, tag = 'sflag constant byte address 0x0 - dummy sync flag']
  #allocation16 [shape = 's32[]', space=sflag, size = 0x4, offset = 0, fixed_abs, tag = 'sflag constant byte address 0x0 - dummy sync flag']
  #allocation17 [shape = 's32[]', space=sflag, size = 0x4, offset = 0, fixed_abs, tag = 'sflag constant byte address 0x0 - dummy sync flag']
  #allocation18 [shape = 's32[]', space=sflag, size = 0x4, offset = 0, fixed_abs, tag = 'sflag constant byte address 0x0 - dummy sync flag']
  #allocation19 [shape = 's32[]', space=sflag, size = 0x4, offset = 0, fixed_abs, tag = 'sflag constant byte address 0x0 - dummy sync flag']
  #allocation20 [shape = 's32[]', space=sflag, size = 0x4, offset = 0, fixed_abs, tag = 'sflag constant byte address 0x0 - dummy sync flag']
  #allocation21 [shape = 's32[]', space=sflag, size = 0x4, offset = 0, fixed_abs, tag = 'sflag constant byte address 0x0 - dummy sync flag']
  #allocation22 [shape = 's32[]', space=sflag, size = 0x4, offset = 0, fixed_abs, tag = 'sflag constant byte address 0x0 - dummy sync flag']
  #allocation23 [shape = 's32[]', space=sflag, size = 0x4, offset = 0, fixed_abs, tag = 'sflag constant byte address 0x0 - dummy sync flag']
  #allocation24 [shape = 's32[]', space=sflag, size = 0x4, offset = 0, fixed_abs, tag = 'sflag constant byte address 0x0 - dummy sync flag']
  #allocation25 [shape = 's32[]', space=sflag, size = 0x4, offset = 0, fixed_abs, tag = 'sflag constant byte address 0x0 - dummy sync flag']
  #allocation26 [shape = 's32[]', space=sflag, size = 0x4, offset = 0, fixed_abs, tag = 'sflag constant byte address 0x0 - dummy sync flag']
  #allocation27 [shape = 's32[]', space=sflag, size = 0x4, offset = 0, fixed_abs, tag = 'sflag constant byte address 0x0 - dummy sync flag']
  #allocation28 [shape = 's32[]', space=sflag, size = 0x4, offset = 0, fixed_abs, tag = 'sflag constant byte address 0x0 - dummy sync flag']
  #allocation29 [shape = 's32[]', space=sflag, size = 0x4, offset = 0, fixed_abs, tag = 'sflag constant byte address 0x0 - dummy sync flag']
  %s0 = inlined_call_operand.<no memory space> [shape: s32[1], index: 0, kind: input, shape index: {}]
  %s1 = inlined_call_operand.vmem [shape: s32[8], index: 1, kind: input, shape index: {}]
  %s2 = inlined_call_operand.hbm [shape: f32[256,128], index: 2, kind: input, shape index: {}]
  %s3 = inlined_call_operand.hbm [shape: f32[256,128], index: 3, kind: input, shape index: {}]
  %s4 = inlined_call_operand.hbm [shape: f32[1,128], index: 4, kind: output, shape index: {}]
  %s5 = sld [smem:[#allocation0]]
  $region46: #{tpu_custom_call.1} parent=0
    _
  %s7 = ssub.s32 1, %s5
  %s8 = scalar_select 0, %s7, %s5
  %9 = sst [smem:[#allocation6]] %s0
  %s10 = sshll.u32 %s1, 4
  %s11 = int_to_ptr.vmem [resolvable:$true] %s10
  %13 = dma.vmem_to_smem %s11, 16, [#allocation7], [#allocation5]
  %14 = dma.done [#allocation5], 16
  %15 = sfence
  $region1: #{tpu_custom_call.1} parent=0
    #allocation8 [shape = 'u8[512]{0}', space=vmem, size = 0x400, scoped, tag = 'output window, operand 0, single buffered']
    #allocation9 [shape = 's32[1]{0}', space=sflag, size = 0x4, scoped, tag = 'scoped memory for tpu_custom_call.1']
    %16 = vsyncpa [#allocation9], 0
    %s17 = sld [smem:[#allocation6]]
    %s18 = smul.addr %s17, 16
    %s19 = scalar_lea.hbm %s2, %s18
    %s20 = scalar_lea.sflag [#allocation4], 8
    // Predicated region
    $region2: #{tpu_custom_call.1} parent=1 // pred_check
      _
    $region3: #{tpu_custom_call.1} parent=1 // pred_check_branch
      %22 = sbr.rel target = $region5
    $region4: #{tpu_custom_call.1} parent=1 // pred_region
      %23 = sst [smem:[#allocation12]] [#allocation11]
      %24 = sst [smem:[#allocation13]] [#allocation10]
    $region5: #{tpu_custom_call.1} parent=1 // pred_fallthru
      _
    %26 = shalt.err (0)
    %s28 = sshll.u32 [#allocation2], 4
    %s29 = int_to_ptr.vmem [resolvable:$true] %s28
    %31 = dma.hbm_to_vmem [thread:$0]  %s19, 16, %s29, %s20
    %s32 = sld [smem:[#allocation7]]
    %s33 = smul.addr %s32, 16
    %s34 = scalar_lea.hbm %s3, %s33
    // Predicated region
    $region6: #{tpu_custom_call.1} parent=1 // pred_check
      _
    $region7: #{tpu_custom_call.1} parent=1 // pred_check_branch
      %36 = sbr.rel target = $region9
    $region8: #{tpu_custom_call.1} parent=1 // pred_region
      %37 = sst [smem:[#allocation12]] [#allocation15]
      %38 = sst [smem:[#allocation13]] [#allocation14]
    $region9: #{tpu_custom_call.1} parent=1 // pred_fallthru
      _
    %40 = shalt.err (0)
    %s42 = sshll.u32 [#allocation3], 4
    %s43 = int_to_ptr.vmem [resolvable:$true] %s42
    %45 = dma.hbm_to_vmem [thread:$0]  %s34, 16, %s43, [#allocation4]
    %s46 = sld [smem:[#allocation7 + $0x1]]
    %s47 = smul.addr %s46, 16
    %s48 = scalar_lea.hbm %s3, %s47
    %s49 = scalar_lea.vmem [#allocation3], 1
    %s50 = scalar_lea.sflag [#allocation4], 1
    // Predicated region
    $region10: #{tpu_custom_call.1} parent=1 // pred_check
      _
    $region11: #{tpu_custom_call.1} parent=1 // pred_check_branch
      %52 = sbr.rel target = $region13
    $region12: #{tpu_custom_call.1} parent=1 // pred_region
      %53 = sst [smem:[#allocation12]] [#allocation17]
      %54 = sst [smem:[#allocation13]] [#allocation16]
    $region13: #{tpu_custom_call.1} parent=1 // pred_fallthru
      _
    %56 = shalt.err (0)
    %s58 = sshll.u32 %s49, 4
    %s59 = int_to_ptr.vmem [resolvable:$true] %s58
    %61 = dma.hbm_to_vmem [thread:$0]  %s48, 16, %s59, %s50
    %s62 = sld [smem:[#allocation7 + $0x2]]
    %s63 = smul.addr %s62, 16
    %s64 = scalar_lea.hbm %s3, %s63
    %s65 = scalar_lea.vmem [#allocation3], 2
    %s66 = scalar_lea.sflag [#allocation4], 2
    // Predicated region
    $region14: #{tpu_custom_call.1} parent=1 // pred_check
      _
    $region15: #{tpu_custom_call.1} parent=1 // pred_check_branch
      %68 = sbr.rel target = $region17
    $region16: #{tpu_custom_call.1} parent=1 // pred_region
      %69 = sst [smem:[#allocation12]] [#allocation19]
      %70 = sst [smem:[#allocation13]] [#allocation18]
    $region17: #{tpu_custom_call.1} parent=1 // pred_fallthru
      _
    %72 = shalt.err (0)
    %s74 = sshll.u32 %s65, 4
    %s75 = int_to_ptr.vmem [resolvable:$true] %s74
    %77 = dma.hbm_to_vmem [thread:$0]  %s64, 16, %s75, %s66
    %s78 = sld [smem:[#allocation7 + $0x3]]
    %s79 = smul.addr %s78, 16
    %s80 = scalar_lea.hbm %s3, %s79
    %s81 = scalar_lea.vmem [#allocation3], 3
    %s82 = scalar_lea.sflag [#allocation4], 3
    // Predicated region
    $region18: #{tpu_custom_call.1} parent=1 // pred_check
      _
    $region19: #{tpu_custom_call.1} parent=1 // pred_check_branch
      %84 = sbr.rel target = $region21
    $region20: #{tpu_custom_call.1} parent=1 // pred_region
      %85 = sst [smem:[#allocation12]] [#allocation21]
      %86 = sst [smem:[#allocation13]] [#allocation20]
    $region21: #{tpu_custom_call.1} parent=1 // pred_fallthru
      _
    %88 = shalt.err (0)
    %s90 = sshll.u32 %s81, 4
    %s91 = int_to_ptr.vmem [resolvable:$true] %s90
    %93 = dma.hbm_to_vmem [thread:$0]  %s80, 16, %s91, %s82
    %s94 = sld [smem:[#allocation7 + $0x4]]
    %s95 = smul.addr %s94, 16
    %s96 = scalar_lea.hbm %s3, %s95
    %s97 = scalar_lea.vmem [#allocation3], 4
    %s98 = scalar_lea.sflag [#allocation4], 4
    // Predicated region
    $region22: #{tpu_custom_call.1} parent=1 // pred_check
      _
    $region23: #{tpu_custom_call.1} parent=1 // pred_check_branch
      %100 = sbr.rel target = $region25
    $region24: #{tpu_custom_call.1} parent=1 // pred_region
      %101 = sst [smem:[#allocation12]] [#allocation23]
      %102 = sst [smem:[#allocation13]] [#allocation22]
    $region25: #{tpu_custom_call.1} parent=1 // pred_fallthru
      _
    %104 = shalt.err (0)
    %s106 = sshll.u32 %s97, 4
    %s107 = int_to_ptr.vmem [resolvable:$true] %s106
    %109 = dma.hbm_to_vmem [thread:$0]  %s96, 16, %s107, %s98
    %s110 = sld [smem:[#allocation7 + $0x5]]
    %s111 = smul.addr %s110, 16
    %s112 = scalar_lea.hbm %s3, %s111
    %s113 = scalar_lea.vmem [#allocation3], 5
    %s114 = scalar_lea.sflag [#allocation4], 5
    // Predicated region
    $region26: #{tpu_custom_call.1} parent=1 // pred_check
      _
    $region27: #{tpu_custom_call.1} parent=1 // pred_check_branch
      %116 = sbr.rel target = $region29
    $region28: #{tpu_custom_call.1} parent=1 // pred_region
      %117 = sst [smem:[#allocation12]] [#allocation25]
      %118 = sst [smem:[#allocation13]] [#allocation24]
    $region29: #{tpu_custom_call.1} parent=1 // pred_fallthru
      _
    %120 = shalt.err (0)
    %s122 = sshll.u32 %s113, 4
    %s123 = int_to_ptr.vmem [resolvable:$true] %s122
    %125 = dma.hbm_to_vmem [thread:$0]  %s112, 16, %s123, %s114
    %s126 = sld [smem:[#allocation7 + $0x6]]
    %s127 = smul.addr %s126, 16
    %s128 = scalar_lea.hbm %s3, %s127
    %s129 = scalar_lea.vmem [#allocation3], 6
    %s130 = scalar_lea.sflag [#allocation4], 6
    // Predicated region
    $region30: #{tpu_custom_call.1} parent=1 // pred_check
      _
    $region31: #{tpu_custom_call.1} parent=1 // pred_check_branch
      %132 = sbr.rel target = $region33
    $region32: #{tpu_custom_call.1} parent=1 // pred_region
      %133 = sst [smem:[#allocation12]] [#allocation27]
      %134 = sst [smem:[#allocation13]] [#allocation26]
    $region33: #{tpu_custom_call.1} parent=1 // pred_fallthru
      _
    %136 = shalt.err (0)
    %s138 = sshll.u32 %s129, 4
    %s139 = int_to_ptr.vmem [resolvable:$true] %s138
    %141 = dma.hbm_to_vmem [thread:$0]  %s128, 16, %s139, %s130
    %s142 = sld [smem:[#allocation7 + $0x7]]
    %s143 = smul.addr %s142, 16
    %s144 = scalar_lea.hbm %s3, %s143
    %s145 = scalar_lea.vmem [#allocation3], 7
    %s146 = scalar_lea.sflag [#allocation4], 7
    // Predicated region
    $region34: #{tpu_custom_call.1} parent=1 // pred_check
      _
    $region35: #{tpu_custom_call.1} parent=1 // pred_check_branch
      %148 = sbr.rel target = $region37
    $region36: #{tpu_custom_call.1} parent=1 // pred_region
      %149 = sst [smem:[#allocation12]] [#allocation29]
      %150 = sst [smem:[#allocation13]] [#allocation28]
    $region37: #{tpu_custom_call.1} parent=1 // pred_fallthru
      _
    %152 = shalt.err (0)
    %s154 = sshll.u32 %s145, 4
    %s155 = int_to_ptr.vmem [resolvable:$true] %s154
    %157 = dma.hbm_to_vmem [thread:$0]  %s144, 16, %s155, %s146
    %s158 = smul.u32 1, 1
    %s159 = sshll.u32 %s158, 4
    %160 = dma.done %s20, %s159
    %s161 = sshll.u32 %s158, 4
    %162 = dma.done [#allocation4], %s161
    %s163 = sshll.u32 %s158, 4
    %164 = dma.done %s50, %s163
    %s165 = sshll.u32 %s158, 4
    %166 = dma.done %s66, %s165
    %s167 = sshll.u32 %s158, 4
    %168 = dma.done %s82, %s167
    %s169 = sshll.u32 %s158, 4
    %170 = dma.done %s98, %s169
    %s171 = sshll.u32 %s158, 4
    %172 = dma.done %s114, %s171
    %s173 = sshll.u32 %s158, 4
    %174 = dma.done %s130, %s173
    %s175 = sshll.u32 %s158, 4
    %176 = dma.done %s146, %s175
    %v177 = vld [vmem:[#allocation2] sm:$0x1]
    %v178 = vld [vmem:[#allocation3] sm:$0xff]
    %v179 = vld [vmem:[#allocation3 + $0x8] sm:$0xff]
    %v180 = vld [vmem:[#allocation3 + $0x10] sm:$0xff]
    %v181 = vld [vmem:[#allocation3 + $0x18] sm:$0xff]
    %v182 = vld [vmem:[#allocation3 + $0x20] sm:$0xff]
    %v183 = vld [vmem:[#allocation3 + $0x28] sm:$0xff]
    %v184 = vld [vmem:[#allocation3 + $0x30] sm:$0xff]
    %v185 = vld [vmem:[#allocation3 + $0x38] sm:$0xff]
    %v186 = vld [vmem:[#allocation3 + $0x40] sm:$0xff]
    %v187 = vld [vmem:[#allocation3 + $0x48] sm:$0xff]
    %v188 = vld [vmem:[#allocation3 + $0x50] sm:$0xff]
    %v189 = vld [vmem:[#allocation3 + $0x58] sm:$0xff]
    %v190 = vld [vmem:[#allocation3 + $0x60] sm:$0xff]
    %v191 = vld [vmem:[#allocation3 + $0x68] sm:$0xff]
    %v192 = vld [vmem:[#allocation3 + $0x70] sm:$0xff]
    %v193 = vld [vmem:[#allocation3 + $0x78] sm:$0xff]
    %194 = vmatprep.subr.mxu0 0.0
    %195 = vmatpush1.xpose.msra.mxu0 %v178
    %196 = vmatprep.subr.mxu0 0.0
    %197 = vmatpush1.xpose.msra.mxu0 %v179
    %198 = vmatprep.subr.mxu0 0.0
    %199 = vmatpush1.xpose.msra.mxu0 %v180
    %200 = vmatprep.subr.mxu0 0.0
    %201 = vmatpush1.xpose.msra.mxu0 %v181
    %202 = vmatprep.subr.mxu0 0.0
    %203 = vmatpush1.xpose.msra.mxu0 %v182
    %204 = vmatprep.subr.mxu0 0.0
    %205 = vmatpush1.xpose.msra.mxu0 %v183
    %206 = vmatprep.subr.mxu0 0.0
    %207 = vmatpush1.xpose.msra.mxu0 %v184
    %208 = vmatprep.subr.mxu0 0.0
    %209 = vmatpush1.xpose.msra.mxu0 %v185
    %210 = vmatprep.subr.mxu0 0.0
    %211 = vmatpush1.xpose.msra.mxu0 %v186
    %212 = vmatprep.subr.mxu0 0.0
    %213 = vmatpush1.xpose.msra.mxu0 %v187
    %214 = vmatprep.subr.mxu0 0.0
    %215 = vmatpush1.xpose.msra.mxu0 %v188
    %216 = vmatprep.subr.mxu0 0.0
    %217 = vmatpush1.xpose.msra.mxu0 %v189
    %218 = vmatprep.subr.mxu0 0.0
    %219 = vmatpush1.xpose.msra.mxu0 %v190
    %220 = vmatprep.subr.mxu0 0.0
    %221 = vmatpush1.xpose.msra.mxu0 %v191
    %222 = vmatprep.subr.mxu0 0.0
    %223 = vmatpush1.xpose.msra.mxu0 %v192
    %224 = vmatprep.subr.mxu0 0.0
    %225 = vmatpush1.xpose.msra.mxu0 %v193
    %226 = vmatprep.subr.mxu0 0.0
    %227 = vmatpush1.xpose.msra.mxu0 0.0
    %228 = vmatprep.subr.mxu0 0.0
    %229 = vmatpush1.xpose.msra.mxu0 0.0
    %230 = vmatprep.subr.mxu0 0.0
    %231 = vmatpush1.xpose.msra.mxu0 0.0
    %232 = vmatprep.subr.mxu0 0.0
    %233 = vmatpush1.xpose.msra.mxu0 0.0
    %234 = vmatprep.subr.mxu0 0.0
    %235 = vmatpush1.xpose.msra.mxu0 0.0
    %236 = vmatprep.subr.mxu0 0.0
    %237 = vmatpush1.xpose.msra.mxu0 0.0
    %238 = vmatprep.subr.mxu0 0.0
    %239 = vmatpush1.xpose.msra.mxu0 0.0
    %240 = vmatprep.subr.mxu0 0.0
    %241 = vmatpush1.xpose.msra.mxu0 0.0
    %242 = vmatprep.subr.mxu0 0.0
    %243 = vmatpush1.xpose.msra.mxu0 0.0
    %244 = vmatprep.subr.mxu0 0.0
    %245 = vmatpush1.xpose.msra.mxu0 0.0
    %246 = vmatprep.subr.mxu0 0.0
    %247 = vmatpush1.xpose.msra.mxu0 0.0
    %248 = vmatprep.subr.mxu0 0.0
    %249 = vmatpush1.xpose.msra.mxu0 0.0
    %250 = vmatprep.subr.mxu0 0.0
    %251 = vmatpush1.xpose.msra.mxu0 0.0
    %252 = vmatprep.subr.mxu0 0.0
    %253 = vmatpush1.xpose.msra.mxu0 0.0
    %254 = vmatprep.subr.mxu0 0.0
    %255 = vmatpush1.xpose.msra.mxu0 0.0
    %256 = vmatprep.subr.mxu0 0.0
    %257 = vmatpush1.xpose.msra.mxu0 0.0
    %258 = vmatprep.mubr.f32.mxu0 0.0
    %259 = vmatmul.mubr.f32.gmra.mrb[0].mxu0 %v177
    %v260 = vpop.f32.mrb[0].mxu0
    %v261 = vadd.f32 0.0, %v260
    %v262 = vpop.f32.mrb[0].mxu0
    %263 = vdwg.mxu0
    %v264 = vlaneseq
    %v265 = vand.u32 %v264, 127
    %vm266 = vcmp.lt.s32.totalorder %v265, 8
    %v267 = vsel %vm266, %v261, -inf
    %vm268 = vcmask 1040384
    %v269 = vsel %vm268, %v267, -inf
    %270 = vmax.xlane.f32.xlu0 %v269
    %v271 = vpop.xlane.xlu0 %270
    %v272 = vsub.f32 %v267, %v271
    %v273 = vmul.f32 %v272, 1.442695
    %v274 = vpow.pop %v273
    %v275 = vsel %vm268, %v274, 0.0
    %276 = vadd.xlane.f32.xlu0 %v275
    %v277 = vpop.xlane.xlu0 %276
    %v278 = vrcp.pop %v277
    %v279 = vmul.f32 %v274, %v278
    %280 = vst [vmem:[#allocation8] sm:$0x1] %v279
    // Predicated region
    $region38: #{tpu_custom_call.1} parent=1 // pred_check
      _
    $region39: #{tpu_custom_call.1} parent=1 // pred_check_branch
      %282 = sbr.rel (0) target = $region41
    $region40: #{tpu_custom_call.1} parent=1 // pred_region
      %s284 = ssub.s32 16, 16
      %285 = vsyncadd [#allocation9], %s284
      %s287 = sshll.u32 [#allocation8], 4
      %s288 = int_to_ptr.vmem [resolvable:$true] %s287
      %290 = dma.vmem_to_hbm [thread:$0]  %s288, 16, %s4, [#allocation9]
    $region41: #{tpu_custom_call.1} parent=1 // pred_fallthru
      _
    // Predicated region
    $region42: #{tpu_custom_call.1} parent=1 // pred_check
      _
    $region43: #{tpu_custom_call.1} parent=1 // pred_check_branch
      %292 = sbr.rel (0) target = $region45
    $region44: #{tpu_custom_call.1} parent=1 // pred_region
      %293 = dma.done [#allocation9], 16
    $region45: #{tpu_custom_call.1} parent=1 // pred_fallthru
      _
    %294 = vsyncpa [#allocation9], 1
  %295 = vsyncmov [#allocation4]
  %s296 = vpop.sfrf %295
  %p297 = scmp.eq.s32.totalorder %s296, 0
  %p298 = pneg %p297
  %300 = shalt.err (%p298)
  %s301 = scalar_lea.sflag [#allocation4], 1
  %302 = vsyncmov %s301
  %s303 = vpop.sfrf %302
  %p304 = scmp.eq.s32.totalorder %s303, 0
  %p305 = pneg %p304
  %307 = shalt.err (%p305)
  %s308 = scalar_lea.sflag [#allocation4], 2
  %309 = vsyncmov %s308
  %s310 = vpop.sfrf %309
  %p311 = scmp.eq.s32.totalorder %s310, 0
  %p312 = pneg %p311
  %314 = shalt.err (%p312)
  %s315 = scalar_lea.sflag [#allocation4], 3
  %316 = vsyncmov %s315
  %s317 = vpop.sfrf %316
  %p318 = scmp.eq.s32.totalorder %s317, 0
  %p319 = pneg %p318
  %321 = shalt.err (%p319)
  %s322 = scalar_lea.sflag [#allocation4], 4
  %323 = vsyncmov %s322
  %s324 = vpop.sfrf %323
  %p325 = scmp.eq.s32.totalorder %s324, 0
  %p326 = pneg %p325
  %328 = shalt.err (%p326)
  %s329 = scalar_lea.sflag [#allocation4], 5
  %330 = vsyncmov %s329
  %s331 = vpop.sfrf %330
  %p332 = scmp.eq.s32.totalorder %s331, 0
  %p333 = pneg %p332
  %335 = shalt.err (%p333)
  %s336 = scalar_lea.sflag [#allocation4], 6
  %337 = vsyncmov %s336
  %s338 = vpop.sfrf %337
  %p339 = scmp.eq.s32.totalorder %s338, 0
  %p340 = pneg %p339
  %342 = shalt.err (%p340)
  %s343 = scalar_lea.sflag [#allocation4], 7
  %344 = vsyncmov %s343
  %s345 = vpop.sfrf %344
  %p346 = scmp.eq.s32.totalorder %s345, 0
  %p347 = pneg %p346
  %349 = shalt.err (%p347)
  %s350 = scalar_lea.sflag [#allocation4], 8
  %351 = vsyncmov %s350
  %s352 = vpop.sfrf %351
  %p353 = scmp.eq.s32.totalorder %s352, 0
  %p354 = pneg %p353
  %356 = shalt.err (%p354)

</llo_original>
